<compile_context>
chip_gen: v7x
topology: tpu7x:2x2x1
jax: 0.10.0
libtpu: 0.0.40
codegen_flags: <defaults>
</compile_context>

<pallas_src>
import jax
import jax.numpy as jnp
from jax.experimental import pallas as pl
from jax.experimental.pallas import tpu as pltpu


def mlp_kernel(xT_ref, w0_ref, b0_ref, w1_ref, b1_ref, o_ref):
    # xT_ref: [5, TB]  (batch on lanes, bf16 or f32)
    # w0_ref: [13, 5] (same dtype as xT), b0_ref: [13, 1] f32
    # w1_ref: [13, 1] f32, b1_ref: [1, 1] f32
    # o_ref : [1, TB] f32  (lane-dense output -> unmasked vst)
    # fc0 on the MXU: wide N = TB keeps the systolic array busy.
    h = jnp.dot(w0_ref[...], xT_ref[...], preferred_element_type=jnp.float32)
    # bias add + relu stay in f32 (v5e VPU has no bf16 path).
    h = jnp.maximum(h + b0_ref[...], 0.0)                       # [13, TB]
    # fc1 is a 13 -> 1 contraction (M=1): keep it off the MXU, do it as a
    # VPU broadcast-multiply + sublane reduce (exact f32, free under mem-bound).
    y = jnp.sum(h * w1_ref[...], axis=0, keepdims=True)         # [1, TB]
    o_ref[...] = (y + b1_ref[...]).astype(o_ref.dtype)


def mymodel00_forward(x, w0, b0, w1, b1, *, tb=512, compute_dtype=jnp.bfloat16):
    """x: [B, 5] f32; params in torch layout: w0 [13,5], b0 [13], w1 [1,13], b1 [1].

    Returns [B] f32 == fc1(relu(fc0(x)))[:, 0].
    """
    B, K = x.shape
    H = w0.shape[0]

    # Batch on the lane (last) axis.  Callers that already hold feature-major
    # data can pass it directly and skip this XLA transpose pass.
    xT = x.T.astype(compute_dtype)                    # [K, B]
    w0c = w0.astype(compute_dtype)                    # [H, K]
    b0c = b0.reshape(H, 1).astype(jnp.float32)        # [H, 1]  (broadcast over lanes)
    w1c = w1.reshape(H, 1).astype(jnp.float32)        # [H, 1]
    b1c = b1.reshape(1, 1).astype(jnp.float32)        # [1, 1]

    # Tile the batch axis in multiples of 128 lanes; clamp so tiny batches are
    # padded to a single 128-wide tile instead of a full default tile.
    tb = pl.cdiv(tb, 128) * 128
    tb = min(tb, pl.cdiv(B, 128) * 128)
    Bp = pl.cdiv(B, tb) * tb
    if Bp != B:
        xT = jnp.pad(xT, ((0, 0), (0, Bp - B)))

    out = pl.pallas_call(
        mlp_kernel,
        out_shape=jax.ShapeDtypeStruct((1, Bp), jnp.float32),
        grid_spec=pltpu.PrefetchScalarGridSpec(
            num_scalar_prefetch=0,
            grid=(Bp // tb,),
            in_specs=[
                pl.BlockSpec((K, tb), lambda i: (0, i)),   # x tile streams per step
                pl.BlockSpec((H, K), lambda i: (0, 0)),    # weights stay VMEM-resident
                pl.BlockSpec((H, 1), lambda i: (0, 0)),
                pl.BlockSpec((H, 1), lambda i: (0, 0)),
                pl.BlockSpec((1, 1), lambda i: (0, 0)),
            ],
            out_specs=pl.BlockSpec((1, tb), lambda i: (0, i)),
        ),
        compiler_params=pltpu.CompilerParams(
            dimension_semantics=("parallel",)),            # megacore on v7x
    )(xT, w0c, b0c, w1c, b1c)

    # [1, Bp] -> [B]; contiguous slice, no per-row gather.
    return out[0, :B]


def init_params(key):
    # Matches torch.nn.Linear default init; weights kept in torch [out, in] layout.
    k0, k1, k2, k3 = jax.random.split(key, 4)
    bound0 = 1.0 / jnp.sqrt(5.0)
    bound1 = 1.0 / jnp.sqrt(13.0)
    w0 = jax.random.uniform(k0, (13, 5), jnp.float32, -bound0, bound0)
    b0 = jax.random.uniform(k1, (13,), jnp.float32, -bound0, bound0)
    w1 = jax.random.uniform(k2, (1, 13), jnp.float32, -bound1, bound1)
    b1 = jax.random.uniform(k3, (1,), jnp.float32, -bound1, bound1)
    return w0, b0, w1, b1


if __name__ == "__main__":
    key = jax.random.PRNGKey(0)
    kx, kp = jax.random.split(key)
    batch = 1000                      # non-multiple of the tile: exercises padding + 2 grid steps
    x = jax.random.normal(kx, (batch, 5), jnp.float32)
    w0, b0, w1, b1 = init_params(kp)

    y = jax.jit(mymodel00_forward)(x, w0, b0, w1, b1)
    jax.block_until_ready(y)
    assert y.shape == (batch,)

    # Tight check against a plain-JAX reference using the same precision policy
    # (bf16 inputs to fc0, f32 accumulation/elementwise).
    xb = x.astype(jnp.bfloat16)
    w0b = w0.astype(jnp.bfloat16)
    h_ref = jnp.maximum(
        jnp.dot(xb, w0b.T, preferred_element_type=jnp.float32) + b0, 0.0)   # [B, 13]
    y_ref_policy = jnp.sum(h_ref * w1.reshape(1, -1), axis=1) + b1[0]       # [B]
    assert jnp.allclose(y, y_ref_policy, atol=1e-3, rtol=1e-3), float(
        jnp.max(jnp.abs(y - y_ref_policy)))

    # Loose sanity check against full-f32 math (the torch module's semantics).
    y_ref_f32 = (jnp.maximum(x @ w0.T + b0, 0.0) @ w1.T + b1)[:, 0]
    assert jnp.allclose(y, y_ref_f32, atol=1e-1, rtol=1e-1), float(
        jnp.max(jnp.abs(y - y_ref_f32)))

    print("KERNEL_OK")
</pallas_src>

<mosaic_0001>
module attributes {stable_mosaic.version = 11 : i64} {
  func.func @mlp_kernel(%arg0: i32, %arg1: memref<5x512xbf16, #tpu.memory_space<vmem>>, %arg2: memref<13x5xbf16, #tpu.memory_space<vmem>>, %arg3: memref<13x1xf32, #tpu.memory_space<vmem>>, %arg4: memref<13x1xf32, #tpu.memory_space<vmem>>, %arg5: memref<1x1xf32, #tpu.memory_space<vmem>>, %arg6: memref<1x512xf32, #tpu.memory_space<vmem>>) attributes {dimension_semantics = [#tpu.dimension_semantics<parallel>], iteration_bounds = array<i64: 2>, scalar_prefetch = 0 : i64, scratch_operands = 0 : i64, tpu.core_type = #tpu.core_type<tc>, window_params = [{transform_indices = @transform_0, window_bounds = array<i64: 5, 512>}, {pipeline_mode = #tpu.pipeline_mode<synchronous>, transform_indices = @transform_1, window_bounds = array<i64: 13, 5>}, {pipeline_mode = #tpu.pipeline_mode<synchronous>, transform_indices = @transform_2, window_bounds = array<i64: 13, 1>}, {pipeline_mode = #tpu.pipeline_mode<synchronous>, transform_indices = @transform_3, window_bounds = array<i64: 13, 1>}, {pipeline_mode = #tpu.pipeline_mode<synchronous>, transform_indices = @transform_4, window_bounds = array<i64: 1, 1>}, {transform_indices = @transform_5, window_bounds = array<i64: 1, 512>}]} {
    %c0 = arith.constant 0 : index
    %c0_0 = arith.constant 0 : index
    %0 = vector.load %arg2[%c0, %c0_0] : memref<13x5xbf16, #tpu.memory_space<vmem>>, vector<13x5xbf16>
    %c0_1 = arith.constant 0 : index
    %c0_2 = arith.constant 0 : index
    %1 = vector.load %arg1[%c0_1, %c0_2] : memref<5x512xbf16, #tpu.memory_space<vmem>>, vector<5x512xbf16>
    %cst = arith.constant dense<0.000000e+00> : vector<13x512xf32>
    %2 = tpu.matmul %0, %1, %cst {dimension_numbers = #tpu.dot_dimension_numbers<[1], [0], [0], [1], [0, 0, 1, 1], [], []>} : vector<13x5xbf16>, vector<5x512xbf16>, vector<13x512xf32> -> vector<13x512xf32>
    %c0_3 = arith.constant 0 : index
    %c0_4 = arith.constant 0 : index
    %3 = vector.load %arg3[%c0_3, %c0_4] : memref<13x1xf32, #tpu.memory_space<vmem>>, vector<13x1xf32>
    %4 = vector.broadcast %3 : vector<13x1xf32> to vector<13x512xf32>
    %5 = arith.addf %2, %4 : vector<13x512xf32>
    %cst_5 = arith.constant 0.000000e+00 : f32
    %6 = vector.broadcast %cst_5 : f32 to vector<13x512xf32>
    %7 = arith.maximumf %5, %6 : vector<13x512xf32>
    %c0_6 = arith.constant 0 : index
    %c0_7 = arith.constant 0 : index
    %8 = vector.load %arg4[%c0_6, %c0_7] : memref<13x1xf32, #tpu.memory_space<vmem>>, vector<13x1xf32>
    %9 = vector.broadcast %8 : vector<13x1xf32> to vector<13x512xf32>
    %10 = arith.mulf %7, %9 : vector<13x512xf32>
    %cst_8 = arith.constant dense<0.000000e+00> : vector<512xf32>
    %11 = vector.multi_reduction <add>, %10, %cst_8 [0] : vector<13x512xf32> to vector<512xf32>
    %12 = vector.shape_cast %11 : vector<512xf32> to vector<1x512xf32>
    %c0_9 = arith.constant 0 : index
    %c0_10 = arith.constant 0 : index
    %13 = vector.load %arg5[%c0_9, %c0_10] : memref<1x1xf32, #tpu.memory_space<vmem>>, vector<1x1xf32>
    %14 = vector.broadcast %13 : vector<1x1xf32> to vector<1x512xf32>
    %15 = arith.addf %12, %14 : vector<1x512xf32>
    %c0_11 = arith.constant 0 : index
    %c0_12 = arith.constant 0 : index
    %16 = vector.load %arg6[%c0_11, %c0_12] : memref<1x512xf32, #tpu.memory_space<vmem>>, vector<1x512xf32>
    tpu.vector_store %arg6[%c0_11, %c0_12], %15 {strides = array<i32>} : memref<1x512xf32, #tpu.memory_space<vmem>>, vector<1x512xf32>,
    return
  }
  func.func @transform_0(%arg0: i32) -> (i32, i32) {
    %c0_i32 = arith.constant 0 : i32
    %c0_i32_0 = arith.constant 0 : i32
    return %c0_i32, %arg0 : i32, i32
  }
  func.func @transform_1(%arg0: i32) -> (i32, i32) {
    %c0_i32 = arith.constant 0 : i32
    %c0_i32_0 = arith.constant 0 : i32
    %c0_i32_1 = arith.constant 0 : i32
    return %c0_i32, %c0_i32_0 : i32, i32
  }
  func.func @transform_2(%arg0: i32) -> (i32, i32) {
    %c0_i32 = arith.constant 0 : i32
    %c0_i32_0 = arith.constant 0 : i32
    %c0_i32_1 = arith.constant 0 : i32
    return %c0_i32, %c0_i32_0 : i32, i32
  }
  func.func @transform_3(%arg0: i32) -> (i32, i32) {
    %c0_i32 = arith.constant 0 : i32
    %c0_i32_0 = arith.constant 0 : i32
    %c0_i32_1 = arith.constant 0 : i32
    return %c0_i32, %c0_i32_0 : i32, i32
  }
  func.func @transform_4(%arg0: i32) -> (i32, i32) {
    %c0_i32 = arith.constant 0 : i32
    %c0_i32_0 = arith.constant 0 : i32
    %c0_i32_1 = arith.constant 0 : i32
    return %c0_i32, %c0_i32_0 : i32, i32
  }
  func.func @transform_5(%arg0: i32) -> (i32, i32) {
    %c0_i32 = arith.constant 0 : i32
    %c0_i32_0 = arith.constant 0 : i32
    return %c0_i32, %arg0 : i32, i32
  }
}

</mosaic_0001>

<llo_original>
// kernel: mymodel00_forward.1
$region0: #{mymodel00_forward.1}
  #allocation0 [shape = 'u32[]', space=smem, size = 0x4, offset = 0x4, fixed_abs, tag = 'smem constant byte address 0x4 - core index']
  #allocation1 [shape = 'u32[144,128]{1,0:T(1,128)}', space=vmem, size = 0x12000, scoped, tag = 'internal scratch']
  #allocation2 [shape = 'f32[1,1]{1,0:T(1,128)S(1)}', space=vmem, size = 0x200, scoped, tag = 'scoped memory for mymodel00_forward.1']
  %s0 = inlined_call_operand.vmem [shape: bf16[5,1024], index: 0, kind: input, shape index: {}]
  %s1 = inlined_call_operand.vmem [shape: bf16[13,5], index: 1, kind: input, shape index: {}]
  %s2 = inlined_call_operand.vmem [shape: f32[13,1], index: 2, kind: input, shape index: {}]
  %s3 = inlined_call_operand.vmem [shape: f32[13,1], index: 3, kind: input, shape index: {}]
  %s4 = inlined_call_operand.<no memory space> [shape: f32[1,1], index: 4, kind: input, shape index: {}]
  %s5 = inlined_call_operand.hbm [shape: f32[1,1024], index: 5, kind: output, shape index: {}]
  %s6 = sld [smem:[#allocation0]]
  $region53: #{mymodel00_forward.1} parent=0
    _
  %s8 = ssub.s32 1, %s6
  %s9 = scalar_select 0, %s8, %s6
  %v10 = vstv %s4
  %11 = vst [vmem:[#allocation2] sm:$0x1] %v10
  $region1: #{mymodel00_forward.1} parent=0
    #allocation3 [shape = 'u8[4096]{0}', space=vmem, size = 0x1000, scoped, tag = 'output window, operand 0']
    #allocation4 [shape = 's32[2]{0}', space=sflag, size = 0x8, scoped, tag = 'scoped memory for mymodel00_forward.1']
    %12 = vsyncpa [#allocation4], 0
    %s13 = scalar_lea.sflag [#allocation4], 1
    %14 = vsyncpa %s13, 0
    loop: start=0, step=1, limit=4
    $region2: #{mymodel00_forward.1} parent=1 // loop_pre_header
      _
    $region3: #{mymodel00_forward.1} parent=1 // loop_header
      %s16 = sphi 0, %s20
      %p17 = scmp.ge.s32.totalorder %s16, 4
      %s26 = sphi 0, %s28
      %s29 = sphi 0, %s26
      %s30 = sphi 0, %s29
      %s46 = sphi 0, %s30
      %s50 = sphi 0, %s50
      %s52 = sphi 0, %s50
      %s53 = sphi 0, %s52
      %s67 = sphi 0, %s53
      %s71 = sphi 0, %s71
      %s73 = sphi 0, %s71
      %s74 = sphi 0, %s73
      %s88 = sphi 0, %s74
      %s92 = sphi 0, %s92
      %s94 = sphi 0, %s92
      %s95 = sphi 0, %s94
      %s109 = sphi 0, %s95
      %s113 = sphi 0, %s113
      %s115 = sphi 0, %s113
      %s116 = sphi 0, %s115
      %s130 = sphi 0, %s116
      %s136 = sphi 0, %s138
      %s139 = sphi 0, %s136
      %s140 = sphi 0, %s139
      %s156 = sphi 0, %s140
    $region4: #{mymodel00_forward.1} parent=1 // loop_header_branch
      %19 = sbr.rel (%p17) target = $region8
    $region5: #{mymodel00_forward.1} parent=1 // loop_body
      %s21 = ssub.s32 %s16, 1
      %s22 = ssub.s32 %s16, 2
      %s23 = sadd.s32 %s16, 1
      %s24 = ssub.s32 %s16, %s23
      %p25 = scmp.eq.s32.totalorder %s24, 0
      %s27 = sadd.s32 %s26, 1
      %s28 = scalar_select %p25, %s26, %s27
      %p31 = pneg %p25
      %p32 = scmp.eq.s32.totalorder %s16, 1
      %p33 = por %p31, %p32
      %p34 = scmp.ne.s32.totalorder %s26, %s29
      %p35 = scmp.eq.s32.totalorder %s16, 0
      %p36 = por %p34, %p35
      %p37 = scmp.ne.s32.totalorder %s26, %s29
      %p38 = scmp.eq.s32.totalorder %s21, 1
      %p39 = por %p37, %p38
      %p40 = scmp.ne.s32.totalorder %s29, %s30
      %p41 = scmp.eq.s32.totalorder %s21, 0
      %p42 = por %p40, %p41
      %p43 = scmp.ne.s32.totalorder %s29, %s30
      %p44 = scmp.eq.s32.totalorder %s22, 1
      %p45 = por %p43, %p44
      %p47 = scmp.ne.s32.totalorder %s30, %s46
      %p48 = scmp.eq.s32.totalorder %s22, 0
      %p49 = por %p47, %p48
      %s51 = sadd.s32 %s50, 1
      %p54 = scmp.eq.s32.totalorder %s16, 1
      %p55 = scmp.ne.s32.totalorder %s50, %s52
      %p56 = scmp.eq.s32.totalorder %s16, 0
      %p57 = por %p55, %p56
      %p58 = scmp.ne.s32.totalorder %s50, %s52
      %p59 = scmp.eq.s32.totalorder %s21, 1
      %p60 = por %p58, %p59
      %p61 = scmp.ne.s32.totalorder %s52, %s53
      %p62 = scmp.eq.s32.totalorder %s21, 0
      %p63 = por %p61, %p62
      %p64 = scmp.ne.s32.totalorder %s52, %s53
      %p65 = scmp.eq.s32.totalorder %s22, 1
      %p66 = por %p64, %p65
      %p68 = scmp.ne.s32.totalorder %s53, %s67
      %p69 = scmp.eq.s32.totalorder %s22, 0
      %p70 = por %p68, %p69
      %s72 = sadd.s32 %s71, 1
      %p75 = scmp.eq.s32.totalorder %s16, 1
      %p76 = scmp.ne.s32.totalorder %s71, %s73
      %p77 = scmp.eq.s32.totalorder %s16, 0
      %p78 = por %p76, %p77
      %p79 = scmp.ne.s32.totalorder %s71, %s73
      %p80 = scmp.eq.s32.totalorder %s21, 1
      %p81 = por %p79, %p80
      %p82 = scmp.ne.s32.totalorder %s73, %s74
      %p83 = scmp.eq.s32.totalorder %s21, 0
      %p84 = por %p82, %p83
      %p85 = scmp.ne.s32.totalorder %s73, %s74
      %p86 = scmp.eq.s32.totalorder %s22, 1
      %p87 = por %p85, %p86
      %p89 = scmp.ne.s32.totalorder %s74, %s88
      %p90 = scmp.eq.s32.totalorder %s22, 0
      %p91 = por %p89, %p90
      %s93 = sadd.s32 %s92, 1
      %p96 = scmp.eq.s32.totalorder %s16, 1
      %p97 = scmp.ne.s32.totalorder %s92, %s94
      %p98 = scmp.eq.s32.totalorder %s16, 0
      %p99 = por %p97, %p98
      %p100 = scmp.ne.s32.totalorder %s92, %s94
      %p101 = scmp.eq.s32.totalorder %s21, 1
      %p102 = por %p100, %p101
      %p103 = scmp.ne.s32.totalorder %s94, %s95
      %p104 = scmp.eq.s32.totalorder %s21, 0
      %p105 = por %p103, %p104
      %p106 = scmp.ne.s32.totalorder %s94, %s95
      %p107 = scmp.eq.s32.totalorder %s22, 1
      %p108 = por %p106, %p107
      %p110 = scmp.ne.s32.totalorder %s95, %s109
      %p111 = scmp.eq.s32.totalorder %s22, 0
      %p112 = por %p110, %p111
      %s114 = sadd.s32 %s113, 1
      %p117 = scmp.eq.s32.totalorder %s16, 1
      %p118 = scmp.ne.s32.totalorder %s113, %s115
      %p119 = scmp.eq.s32.totalorder %s16, 0
      %p120 = por %p118, %p119
      %p121 = scmp.ne.s32.totalorder %s113, %s115
      %p122 = scmp.eq.s32.totalorder %s21, 1
      %p123 = por %p121, %p122
      %p124 = scmp.ne.s32.totalorder %s115, %s116
      %p125 = scmp.eq.s32.totalorder %s21, 0
      %p126 = por %p124, %p125
      %p127 = scmp.ne.s32.totalorder %s115, %s116
      %p128 = scmp.eq.s32.totalorder %s22, 1
      %p129 = por %p127, %p128
      %p131 = scmp.ne.s32.totalorder %s116, %s130
      %p132 = scmp.eq.s32.totalorder %s22, 0
      %p133 = por %p131, %p132
      %s134 = ssub.s32 %s16, %s23
      %p135 = scmp.eq.s32.totalorder %s134, 0
      %s137 = sadd.s32 %s136, 1
      %s138 = scalar_select %p135, %s136, %s137
      %p141 = pneg %p135
      %p142 = scmp.eq.s32.totalorder %s16, 1
      %p143 = por %p141, %p142
      %p144 = scmp.ne.s32.totalorder %s136, %s139
      %p145 = scmp.eq.s32.totalorder %s16, 0
      %p146 = por %p144, %p145
      %p147 = scmp.ne.s32.totalorder %s136, %s139
      %p148 = scmp.eq.s32.totalorder %s21, 1
      %p149 = por %p147, %p148
      %p150 = scmp.ne.s32.totalorder %s139, %s140
      %p151 = scmp.eq.s32.totalorder %s21, 0
      %p152 = por %p150, %p151
      %p153 = scmp.ne.s32.totalorder %s139, %s140
      %p154 = scmp.eq.s32.totalorder %s22, 1
      %p155 = por %p153, %p154
      %p157 = scmp.ne.s32.totalorder %s140, %s156
      %p158 = scmp.eq.s32.totalorder %s22, 0
      %p159 = por %p157, %p158
      %p160 = scmp.le.s32.totalorder 1, %s16
      %p161 = scmp.lt.s32.totalorder %s16, 3
      %p162 = pnand %p160, %p161
      %p163 = pneg %p162
      // Predicated region
      $region9: #{mymodel00_forward.1} parent=5 // pred_check
        _
      $region10: #{mymodel00_forward.1} parent=5 // pred_check_branch
        %165 = sbr.rel (%p162) target = $region12
      $region11: #{mymodel00_forward.1} parent=5 // pred_region
        %s166 = ssub.s32 %s16, 1
        // Predicated region
        $region13: #{mymodel00_forward.1} parent=11 // pred_check
          %p167 = pneg %p63
        $region14: #{mymodel00_forward.1} parent=11 // pred_check_branch
          %169 = sbr.rel (%p167) target = $region16
        $region15: #{mymodel00_forward.1} parent=11 // pred_region
          _
        $region16: #{mymodel00_forward.1} parent=11 // pred_fallthru
          _
        // Predicated region
        $region17: #{mymodel00_forward.1} parent=11 // pred_check
          %p170 = pneg %p84
        $region18: #{mymodel00_forward.1} parent=11 // pred_check_branch
          %172 = sbr.rel (%p170) target = $region20
        $region19: #{mymodel00_forward.1} parent=11 // pred_region
          _
        $region20: #{mymodel00_forward.1} parent=11 // pred_fallthru
          _
        // Predicated region
        $region21: #{mymodel00_forward.1} parent=11 // pred_check
          %p173 = pneg %p105
        $region22: #{mymodel00_forward.1} parent=11 // pred_check_branch
          %175 = sbr.rel (%p173) target = $region24
        $region23: #{mymodel00_forward.1} parent=11 // pred_region
          _
        $region24: #{mymodel00_forward.1} parent=11 // pred_fallthru
          _
        // Predicated region
        $region25: #{mymodel00_forward.1} parent=11 // pred_check
          %p176 = pneg %p126
        $region26: #{mymodel00_forward.1} parent=11 // pred_check_branch
          %178 = sbr.rel (%p176) target = $region28
        $region27: #{mymodel00_forward.1} parent=11 // pred_region
          _
        $region28: #{mymodel00_forward.1} parent=11 // pred_fallthru
          _
      $region12: #{mymodel00_forward.1} parent=5 // pred_fallthru
        _
      %p179 = scmp.lt.s32.totalorder %s16, 2
      // Predicated region
      $region29: #{mymodel00_forward.1} parent=5 // pred_check
        %p180 = pneg %p179
      $region30: #{mymodel00_forward.1} parent=5 // pred_check_branch
        %182 = sbr.rel (%p180) target = $region32
      $region31: #{mymodel00_forward.1} parent=5 // pred_region
        // Predicated region
        $region33: #{mymodel00_forward.1} parent=31 // pred_check
          %p183 = pneg %p36
        $region34: #{mymodel00_forward.1} parent=31 // pred_check_branch
          %185 = sbr.rel (%p183) target = $region36
        $region35: #{mymodel00_forward.1} parent=31 // pred_region
          %s186 = smul.u32 4, %s16
          %p187 = scmp.lt.s32.totalorder %s186, 7
          %s188 = scalar_select %p187, %s186, 7
          %s189 = smul.addr %s188, 4
          %s190 = scalar_lea.vmem %s0, %s189
          %s191 = smul.u32 4, %s16
        $region36: #{mymodel00_forward.1} parent=31 // pred_fallthru
          _
      $region32: #{mymodel00_forward.1} parent=5 // pred_fallthru
        _
      %p192 = scmp.le.s32.totalorder 1, %s16
      %p193 = scmp.lt.s32.totalorder %s16, 3
      %p194 = pnand %p192, %p193
      %p195 = pneg %p194
      // Predicated region
      $region37: #{mymodel00_forward.1} parent=5 // pred_check
        _
      $region38: #{mymodel00_forward.1} parent=5 // pred_check_branch
        %197 = sbr.rel (%p194) target = $region40
      $region39: #{mymodel00_forward.1} parent=5 // pred_region
        %s198 = ssub.s32 %s16, 1
        %s199 = smul.u32 4, %s21
        %p200 = scmp.lt.s32.totalorder %s199, 7
        %s201 = scalar_select %p200, %s199, 7
        %s202 = smul.addr %s201, 4
        %s203 = scalar_lea.vmem %s0, %s202
        %p204 = pneg %p42
        %p205 = pneg %p39
        %p206 = pneg %p63
        %p207 = pneg %p60
        %p208 = pneg %p84
        %p209 = pneg %p81
        %p210 = pneg %p105
        %p211 = pneg %p102
        %p212 = pneg %p126
        %p213 = pneg %p123
        %p214 = pneg %p152
        %p215 = pneg %p149
        %s216 = sand.u32 %s139, 1
        %s217 = scalar_lea.sflag [#allocation4], %s216
        %s218 = sand.u32 %s139, 1
        %s219 = smul.addr %s218, 4
        %s220 = scalar_lea.vmem [#allocation3], %s219
        %s221 = smul.u32 4, %s21
        %p222 = scmp.lt.s32.totalorder %s221, 7
        %s223 = scalar_select %p222, %s221, 7
        %s224 = smul.addr %s223, 4
        %s225 = scalar_lea.vmem %s0, %s224
        %s226 = smul.u32 4, %s21
        %s227 = smul.u32 4, %s21
        %v229 = vld [vmem:[%s1] sm:$0xf]
        %v230 = vld [vmem:[%s1 + $0x4] sm:$0x7]
        %v231 = vld [vmem:[%s225] sm:$0x77]
        %v232 = vld [vmem:[%s225 + $0x8] sm:$0x77]
        %v233 = vld [vmem:[%s2] sm:$0xff]
        %v234 = vld [vmem:[%s2 + $0x8] sm:$0x1f]
        %236 = vset.pattern.permute.xlu0 0
        %237 = vperm.xlu0 %236, %v233
        %v238 = vpop.permute.xlu0 %237
        %241 = vset.pattern.permute.xlu0 0
        %242 = vperm.xlu0 %241, %v234
        %v243 = vpop.permute.xlu0 %242
        %v247 = vunpack.c.l.b16 %v229
        %v248 = vunpack.c.l.b16 %v230
        %v249 = vpack.c.b16 %v248, %v247
        %v252 = vunpack.c.l.b16 %v231
        %v253 = vunpack.c.h.b16 %v231
        %v254 = vunpack.c.l.b16 %v232
        %v255 = vunpack.c.h.b16 %v232
        %v256 = vpack.c.b16 %v252, %v252
        %v257 = vpack.c.b16 %v253, %v253
        %v258 = vpack.c.b16 %v254, %v254
        %v259 = vpack.c.b16 %v255, %v255
        %vm260 = vcmask 39936
        %v262 = vsel %vm260, %v249, 0
        %vm264 = vcmask 1041408
        %vm265 = vcmask 1042432
        %v266 = vsel %vm264, 4294967295, 65535
        %v267 = vsel %vm265, %v266, 0
        %v269 = vand.u32 %v256, %v267
        %v272 = vand.u32 %v257, %v267
        %v275 = vand.u32 %v258, %v267
        %v278 = vand.u32 %v259, %v267
        %280 = vmatprep.subr.bf16.mxu0 %v272
        %281 = vmatpush1.bf16.msra.mxu0 %v269
        %282 = vmatprep.subr.bf16.mxu0 0
        %283 = vmatpush1.bf16.msra.mxu0 0
        %284 = vmatprep.subr.bf16.mxu0 0
        %285 = vmatpush1.bf16.msra.mxu0 0
        %286 = vmatprep.subr.bf16.mxu0 0
        %287 = vmatpush1.bf16.msra.mxu0 0
        %288 = vmatprep.subr.bf16.mxu0 0
        %289 = vmatpush1.bf16.msra.mxu0 0
        %290 = vmatprep.subr.bf16.mxu0 0
        %291 = vmatpush1.bf16.msra.mxu0 0
        %292 = vmatprep.subr.bf16.mxu0 0
        %293 = vmatpush1.bf16.msra.mxu0 0
        %294 = vmatprep.subr.bf16.mxu0 0
        %295 = vmatpush1.bf16.msra.mxu0 0
        %296 = vmatprep.subr.bf16.mxu0 0
        %297 = vmatpush1.bf16.msra.mxu0 0
        %298 = vmatprep.subr.bf16.mxu0 0
        %299 = vmatpush1.bf16.msra.mxu0 0
        %300 = vmatprep.subr.bf16.mxu0 0
        %301 = vmatpush1.bf16.msra.mxu0 0
        %302 = vmatprep.subr.bf16.mxu0 0
        %303 = vmatpush1.bf16.msra.mxu0 0
        %304 = vmatprep.subr.bf16.mxu0 0
        %305 = vmatpush1.bf16.msra.mxu0 0
        %306 = vmatprep.subr.bf16.mxu0 0
        %307 = vmatpush1.bf16.msra.mxu0 0
        %308 = vmatprep.subr.bf16.mxu0 0
        %309 = vmatpush1.bf16.msra.mxu0 0
        %310 = vmatprep.subr.bf16.mxu0 0
        %311 = vmatpush1.bf16.msra.mxu0 0
        %312 = vmatprep.mubr.bf16.mxu0 0
        %313 = vmatmul.mubr.bf16.gmra.mrb[0].mxu0 %v262
        %v314 = vpop.f32.mrb[0].mxu0
        %v315 = vadd.f32 %v238, %v314
        %v316 = vpop.f32.mrb[0].mxu0
        %v317 = vadd.f32 %v238, %v316
        %v318 = vpop.f32.mrb[0].mxu0
        %v319 = vadd.f32 %v243, %v318
        %v320 = vpop.f32.mrb[0].mxu0
        %v321 = vadd.f32 %v243, %v320
        %322 = vdwg.mxu0
        %323 = vmatprep.subr.bf16.mxu0 %v278
        %324 = vmatpush1.bf16.msra.mxu0 %v275
        %325 = vmatprep.subr.bf16.mxu0 0
        %326 = vmatpush1.bf16.msra.mxu0 0
        %327 = vmatprep.subr.bf16.mxu0 0
        %328 = vmatpush1.bf16.msra.mxu0 0
        %329 = vmatprep.subr.bf16.mxu0 0
        %330 = vmatpush1.bf16.msra.mxu0 0
        %331 = vmatprep.subr.bf16.mxu0 0
        %332 = vmatpush1.bf16.msra.mxu0 0
        %333 = vmatprep.subr.bf16.mxu0 0
        %334 = vmatpush1.bf16.msra.mxu0 0
        %335 = vmatprep.subr.bf16.mxu0 0
        %336 = vmatpush1.bf16.msra.mxu0 0
        %337 = vmatprep.subr.bf16.mxu0 0
        %338 = vmatpush1.bf16.msra.mxu0 0
        %339 = vmatprep.subr.bf16.mxu0 0
        %340 = vmatpush1.bf16.msra.mxu0 0
        %341 = vmatprep.subr.bf16.mxu0 0
        %342 = vmatpush1.bf16.msra.mxu0 0
        %343 = vmatprep.subr.bf16.mxu0 0
        %344 = vmatpush1.bf16.msra.mxu0 0
        %345 = vmatprep.subr.bf16.mxu0 0
        %346 = vmatpush1.bf16.msra.mxu0 0
        %347 = vmatprep.subr.bf16.mxu0 0
        %348 = vmatpush1.bf16.msra.mxu0 0
        %349 = vmatprep.subr.bf16.mxu0 0
        %350 = vmatpush1.bf16.msra.mxu0 0
        %351 = vmatprep.subr.bf16.mxu0 0
        %352 = vmatpush1.bf16.msra.mxu0 0
        %353 = vmatprep.subr.bf16.mxu0 0
        %354 = vmatpush1.bf16.msra.mxu0 0
        %355 = vmatprep.mubr.bf16.mxu0 0
        %356 = vmatmul.mubr.bf16.gmra.mrb[0].mxu0 %v262
        %v357 = vpop.f32.mrb[0].mxu0
        %v358 = vadd.f32 %v238, %v357
        %v359 = vpop.f32.mrb[0].mxu0
        %v360 = vadd.f32 %v238, %v359
        %v361 = vpop.f32.mrb[0].mxu0
        %v362 = vadd.f32 %v243, %v361
        %v363 = vpop.f32.mrb[0].mxu0
        %v364 = vadd.f32 %v243, %v363
        %365 = vdwg.mxu0
        %v366 = vmax.f32 %v315, 0.0
        %v367 = vmax.f32 %v317, 0.0
        %v368 = vmax.f32 %v358, 0.0
        %v369 = vmax.f32 %v360, 0.0
        %v370 = vmax.f32 %v319, 0.0
        %v371 = vmax.f32 %v321, 0.0
        %v372 = vmax.f32 %v362, 0.0
        %v373 = vmax.f32 %v364, 0.0
        %v374 = vld [vmem:[%s3] sm:$0xff]
        %v375 = vld [vmem:[%s3 + $0x8] sm:$0x1f]
        %377 = vset.pattern.permute.xlu0 0
        %378 = vperm.xlu0 %377, %v374
        %v379 = vpop.permute.xlu0 %378
        %382 = vset.pattern.permute.xlu0 0
        %383 = vperm.xlu0 %382, %v375
        %v384 = vpop.permute.xlu0 %383
        %v386 = vmul.f32 %v366, %v379
        %v387 = vmul.f32 %v367, %v379
        %v388 = vmul.f32 %v368, %v379
        %v389 = vmul.f32 %v369, %v379
        %v390 = vmul.f32 %v370, %v384
        %v391 = vmul.f32 %v371, %v384
        %v392 = vmul.f32 %v372, %v384
        %v393 = vmul.f32 %v373, %v384
        %vm394 = vcmask 1044480
        %v395 = vsel %vm394, %v390, 0.0
        %v396 = vadd.f32 %v386, %v395
        %v397 = vrot.slane %v396, 4
        %v398 = vadd.f32 %v396, %v397
        %v399 = vrot.slane %v398, 2
        %v400 = vadd.f32 %v398, %v399
        %v401 = vrot.slane %v400, 1
        %v402 = vadd.f32 %v400, %v401
        %v403 = vsel %vm394, %v391, 0.0
        %v404 = vadd.f32 %v387, %v403
        %v405 = vrot.slane %v404, 4
        %v406 = vadd.f32 %v404, %v405
        %v407 = vrot.slane %v406, 2
        %v408 = vadd.f32 %v406, %v407
        %v409 = vrot.slane %v408, 1
        %v410 = vadd.f32 %v408, %v409
        %v411 = vsel %vm394, %v392, 0.0
        %v412 = vadd.f32 %v388, %v411
        %v413 = vrot.slane %v412, 4
        %v414 = vadd.f32 %v412, %v413
        %v415 = vrot.slane %v414, 2
        %v416 = vadd.f32 %v414, %v415
        %v417 = vrot.slane %v416, 1
        %v418 = vadd.f32 %v416, %v417
        %v419 = vsel %vm394, %v393, 0.0
        %v420 = vadd.f32 %v389, %v419
        %v421 = vrot.slane %v420, 4
        %v422 = vadd.f32 %v420, %v421
        %v423 = vrot.slane %v422, 2
        %v424 = vadd.f32 %v422, %v423
        %v425 = vrot.slane %v424, 1
        %v426 = vadd.f32 %v424, %v425
        %v427 = vld [vmem:[#allocation2] sm:$0x1]
        %429 = vset.pattern.permute.xlu0 0
        %430 = vperm.xlu0 %429, %v427
        %v431 = vpop.permute.xlu0 %430
        %v433 = vlaneseq
        %v434 = vshrl.u32 %v433, 7
        %v435 = vsub.s32 0, %v434
        %v436 = vrot.slane %v431, %v435
        %v437 = vadd.f32 %v402, %v436
        %v438 = vadd.f32 %v410, %v436
        %v439 = vadd.f32 %v418, %v436
        %v440 = vadd.f32 %v426, %v436
        %v445 = vcombine.low %v437, %v438
        %v446 = vcombine.low %v439, %v440
        %v448 = vunpack.c.l.s4 1966171168
        %v449 = vunpack.c.0.s8 %v448
        %v450 = vlaneseq
        %v451 = vshrl.u32 %v450, 7
        %v452 = vsub.s32 %v449, %v451
        %v453 = vrot.slane %v445, %v452
        %v455 = vunpack.c.l.s4 1966171168
        %v456 = vunpack.c.0.s8 %v455
        %v457 = vlaneseq
        %v458 = vshrl.u32 %v457, 7
        %v459 = vsub.s32 %v456, %v458
        %v460 = vrot.slane %v446, %v459
        %v461 = vcombine.low %v453, %v460
        %v463 = vunpack.c.l.s4 1966171168
        %v464 = vunpack.c.0.s8 %v463
        %v465 = vlaneseq
        %v466 = vshrl.u32 %v465, 7
        %v467 = vsub.s32 %v464, %v466
        %v468 = vrot.slane %v461, %v467
        %v470 = vlaneseq
        %vm471 = vcmp.ge.s32.totalorder %v470, 0
        %vm472 = vcmp.lt.s32.totalorder %v470, 512
        %vm473 = vmand %vm471, %vm472
        %474 = vst.msk [vmem:[%s220] sm:$0xf] %vm473, %v468
        %s475 = sand.u32 %s139, 1
        %s476 = scalar_lea.sflag [#allocation4], %s475
        %s477 = sand.u32 %s139, 1
        %s478 = smul.addr %s477, 4
        %s479 = scalar_lea.vmem [#allocation3], %s478
        // Predicated region
        $region41: #{mymodel00_forward.1} parent=39 // pred_check
          %p480 = pneg %p149
        $region42: #{mymodel00_forward.1} parent=39 // pred_check_branch
          %482 = sbr.rel (%p480) target = $region44
        $region43: #{mymodel00_forward.1} parent=39 // pred_region
          %s483 = smul.u32 4, %s21
          %s485 = ssub.s32 64, 64
          %486 = vsyncadd %s476, %s485
          %s487 = smul.addr %s483, 16
          %s488 = scalar_lea.hbm %s5, %s487
          %s490 = sshll.u32 %s479, 4
          %s491 = int_to_ptr.vmem [resolvable:$true] %s490
          %493 = dma.vmem_to_hbm [thread:$0]  %s491, 64, %s488, %s476
        $region44: #{mymodel00_forward.1} parent=39 // pred_fallthru
          _
      $region40: #{mymodel00_forward.1} parent=5 // pred_fallthru
        _
      %p494 = scmp.le.s32.totalorder 2, %s16
      // Predicated region
      $region45: #{mymodel00_forward.1} parent=5 // pred_check
        %p495 = pneg %p494
      $region46: #{mymodel00_forward.1} parent=5 // pred_check_branch
        %497 = sbr.rel (%p495) target = $region48
      $region47: #{mymodel00_forward.1} parent=5 // pred_region
        %s498 = ssub.s32 %s16, 2
        // Predicated region
        $region49: #{mymodel00_forward.1} parent=47 // pred_check
          %p499 = pneg %p155
        $region50: #{mymodel00_forward.1} parent=47 // pred_check_branch
          %501 = sbr.rel (%p499) target = $region52
        $region51: #{mymodel00_forward.1} parent=47 // pred_region
          %s502 = sand.u32 %s140, 1
          %s503 = scalar_lea.sflag [#allocation4], %s502
          %s504 = sand.u32 %s140, 1
          %s505 = smul.addr %s504, 4
          %s506 = scalar_lea.vmem [#allocation3], %s505
          %507 = dma.done %s503, 64
        $region52: #{mymodel00_forward.1} parent=47 // pred_fallthru
          _
      $region48: #{mymodel00_forward.1} parent=5 // pred_fallthru
        _
    $region6: #{mymodel00_forward.1} parent=1 // loop_footer
      %s20 = sadd.s32 1, %s16
    $region7: #{mymodel00_forward.1} parent=1 // loop_footer_branch
      %15 = sbr.rel target = $region3
    $region8: #{mymodel00_forward.1} parent=1 // loop_exit
      _
    %508 = vsyncpa [#allocation4], 1
    %s509 = scalar_lea.sflag [#allocation4], 1
    %510 = vsyncpa %s509, 1

</llo_original>
